<compile_context>
chip_gen: v5e
topology: v5e:2x2
jax: 0.10.0
libtpu: 0.0.40
codegen_flags: <defaults>
</compile_context>

<pallas_src>
import jax
import jax.numpy as jnp
from jax.experimental import pallas as pl
from jax.experimental.pallas import tpu as pltpu


def _round_up(x, m):
    return ((x + m - 1) // m) * m


def _critic_mlp_kernel(x_ref, w1_ref, b1_ref, w2_ref, b2_ref, w3_ref, b3_ref, o_ref):
    """Fused critic value head in [feature, batch] layout.

    x_ref : [obs_dim, TILE_B]  states tile, batch on the lane axis
    w1    : [H, obs_dim]   b1 : [H, 1]
    w2    : [H, H]         b2 : [H, 1]
    w3    : [H, 1]         b3 : [1, 1]
    o_ref : [1, TILE_B]    lane-dense value row
    """
    h1 = jnp.dot(w1_ref[...], x_ref[...], preferred_element_type=jnp.float32)
    h1 = jnp.tanh(h1 + b1_ref[...])                                  # [H, TILE_B], f32

    h2 = jnp.dot(w2_ref[...], h1.astype(w2_ref.dtype),
                 preferred_element_type=jnp.float32)
    h2 = jnp.tanh(h2 + b2_ref[...])                                  # [H, TILE_B], f32

    # Final Linear(H, 1): broadcast-mul + sublane reduce (VPU+XLU), keeping the
    # N=1 projection off the MXU.
    v = jnp.sum(h2 * w3_ref[...], axis=0, keepdims=True) + b3_ref[...]  # [1, TILE_B]
    o_ref[...] = v.astype(o_ref.dtype)


def critic_network_pallas(states, params, *, tile_b=512, matmul_dtype=jnp.float32):
    """Critic MLP forward pass. states: [B, obs_dim] -> values: [B, 1]."""
    B, obs_dim = states.shape
    H = params["w1"].shape[0]

    # Lane-dense batch tile (multiple of 128); pad batch up to a grid multiple.
    tb = min(_round_up(tile_b, 128), _round_up(B, 128))
    padded_b = _round_up(B, tb)
    grid = (padded_b // tb,)

    x = states.astype(jnp.float32)
    if padded_b != B:
        x = jnp.pad(x, ((0, padded_b - B), (0, 0)))
    # Layout plumbing in the wrapper: put batch on the lane axis.
    x_t = x.T.astype(matmul_dtype)                                   # [obs_dim, padded_b]

    w1 = params["w1"].astype(matmul_dtype)                           # [H, obs_dim]
    w2 = params["w2"].astype(matmul_dtype)                           # [H, H]
    b1 = params["b1"].astype(jnp.float32)                            # [H, 1]
    b2 = params["b2"].astype(jnp.float32)                            # [H, 1]
    w3 = params["w3"].astype(jnp.float32)                            # [H, 1]
    b3 = params["b3"].astype(jnp.float32)                            # [1, 1]

    def resident(shape):
        # Constant block index -> weight stays VMEM-resident, DMA'd once.
        return pl.BlockSpec(shape, lambda i: (0, 0))

    itemsize = jnp.dtype(matmul_dtype).itemsize
    weight_bytes = sum(int(a.size) * a.dtype.itemsize for a in (w1, b1, w2, b2, w3, b3))
    tile_bytes = obs_dim * tb * itemsize + tb * 4
    vmem_limit = int(min(32 << 20,
                         max(4 << 20, 2 * tile_bytes + 2 * weight_bytes + (2 << 20))))

    cost = pl.CostEstimate(
        flops=2 * padded_b * (obs_dim * H + H * H + H),
        transcendentals=2 * padded_b * H,
        bytes_accessed=int(x_t.size) * itemsize + weight_bytes + padded_b * 4,
    )

    out = pl.pallas_call(
        _critic_mlp_kernel,
        out_shape=jax.ShapeDtypeStruct((1, padded_b), jnp.float32),
        grid=grid,
        in_specs=[
            pl.BlockSpec((obs_dim, tb), lambda i: (0, i)),   # streamed states tile
            resident((H, obs_dim)),
            resident((H, 1)),
            resident((H, H)),
            resident((H, 1)),
            resident((H, 1)),
            resident((1, 1)),
        ],
        out_specs=pl.BlockSpec((1, tb), lambda i: (0, i)),   # lane-dense output row
        compiler_params=pltpu.CompilerParams(
            dimension_semantics=("parallel",),
            vmem_limit_bytes=vmem_limit,
        ),
        cost_estimate=cost,
    )(x_t, w1, b1, w2, b2, w3, b3)

    # Back to torch's Linear(hidden, 1) output layout: [B, 1].
    return out[:, :B].T


def critic_module_forward(buffer, params, in_key="states", out_key="values",
                          **kwargs):
    """Pallas equivalent of CriticModule.forward: buffer[out] = network(buffer[in])."""
    buffer[out_key] = critic_network_pallas(buffer[in_key], params, **kwargs)
    return buffer


def init_critic_params(key, obs_dim, hidden):
    """Synthetic params, stored in kernel layout (torch-style [out, in] weights)."""
    k1, k2, k3 = jax.random.split(key, 3)
    s1 = 1.0 / jnp.sqrt(obs_dim)
    s2 = 1.0 / jnp.sqrt(hidden)
    return {
        "w1": jax.random.uniform(k1, (hidden, obs_dim), jnp.float32, -s1, s1),
        "b1": jnp.zeros((hidden, 1), jnp.float32),
        "w2": jax.random.uniform(k2, (hidden, hidden), jnp.float32, -s2, s2),
        "b2": jnp.zeros((hidden, 1), jnp.float32),
        "w3": jax.random.uniform(k3, (hidden, 1), jnp.float32, -s2, s2),
        "b3": jnp.zeros((1, 1), jnp.float32),
    }


def critic_reference(states, params):
    """Pure-JAX reference matching the torch module."""
    h1 = jnp.tanh(states @ params["w1"].T + params["b1"].T)
    h2 = jnp.tanh(h1 @ params["w2"].T + params["b2"].T)
    return h2 @ params["w3"] + params["b3"]


if __name__ == "__main__":
    key = jax.random.PRNGKey(0)
    k_params, k_states, k_states2 = jax.random.split(key, 3)

    obs_dim, hidden = 16, 32
    params = init_critic_params(k_params, obs_dim, hidden)

    # Small-batch path (batch padded up to one 128-wide lane tile).
    states = jax.random.normal(k_states, (8, obs_dim), jnp.float32)
    buffer = {"states": states}
    buffer = critic_module_forward(buffer, params)
    values = jax.block_until_ready(buffer["values"])
    ref = critic_reference(states, params)
    assert values.shape == (8, 1)
    assert jnp.allclose(values, ref, atol=1e-5, rtol=1e-5)

    # Multi-tile grid + padding path (tile_b=128 -> grid of 3, 260 -> 384 padded).
    states2 = jax.random.normal(k_states2, (260, obs_dim), jnp.float32)
    v2 = jax.block_until_ready(critic_network_pallas(states2, params, tile_b=128))
    assert v2.shape == (260, 1)
    assert jnp.allclose(v2, critic_reference(states2, params), atol=1e-5, rtol=1e-5)

    # bf16 matmul-input path (f32 accumulation, f32 elementwise) for v6e/v7x.
    v3 = jax.block_until_ready(
        critic_network_pallas(states, params, matmul_dtype=jnp.bfloat16))
    assert jnp.allclose(v3, ref, atol=3e-2, rtol=3e-2)

    print("KERNEL_OK")
</pallas_src>

<mosaic_0001>
module attributes {stable_mosaic.version = 11 : i64} {
  func.func @_critic_mlp_kernel(%arg0: i32, %arg1: memref<16x128xf32, #tpu.memory_space<vmem>>, %arg2: memref<32x16xf32, #tpu.memory_space<vmem>>, %arg3: memref<32x1xf32, #tpu.memory_space<vmem>>, %arg4: memref<32x32xf32, #tpu.memory_space<vmem>>, %arg5: memref<32x1xf32, #tpu.memory_space<vmem>>, %arg6: memref<32x1xf32, #tpu.memory_space<vmem>>, %arg7: memref<1x1xf32, #tpu.memory_space<vmem>>, %arg8: memref<1x128xf32, #tpu.memory_space<vmem>>) attributes {dimension_semantics = [#tpu.dimension_semantics<parallel>], iteration_bounds = array<i64: 1>, scalar_prefetch = 0 : i64, scratch_operands = 0 : i64, tpu.core_type = #tpu.core_type<tc>, window_params = [{transform_indices = @transform_0, window_bounds = array<i64: 16, 128>}, {pipeline_mode = #tpu.pipeline_mode<synchronous>, transform_indices = @transform_1, window_bounds = array<i64: 32, 16>}, {pipeline_mode = #tpu.pipeline_mode<synchronous>, transform_indices = @transform_2, window_bounds = array<i64: 32, 1>}, {pipeline_mode = #tpu.pipeline_mode<synchronous>, transform_indices = @transform_3, window_bounds = array<i64: 32, 32>}, {pipeline_mode = #tpu.pipeline_mode<synchronous>, transform_indices = @transform_4, window_bounds = array<i64: 32, 1>}, {pipeline_mode = #tpu.pipeline_mode<synchronous>, transform_indices = @transform_5, window_bounds = array<i64: 32, 1>}, {pipeline_mode = #tpu.pipeline_mode<synchronous>, transform_indices = @transform_6, window_bounds = array<i64: 1, 1>}, {transform_indices = @transform_7, window_bounds = array<i64: 1, 128>}]} {
    %c0 = arith.constant 0 : index
    %c0_0 = arith.constant 0 : index
    %0 = vector.load %arg2[%c0, %c0_0] : memref<32x16xf32, #tpu.memory_space<vmem>>, vector<32x16xf32>
    %c0_1 = arith.constant 0 : index
    %c0_2 = arith.constant 0 : index
    %1 = vector.load %arg1[%c0_1, %c0_2] : memref<16x128xf32, #tpu.memory_space<vmem>>, vector<16x128xf32>
    %cst = arith.constant dense<0.000000e+00> : vector<32x128xf32>
    %2 = tpu.matmul %0, %1, %cst {dimension_numbers = #tpu.dot_dimension_numbers<[1], [0], [0], [1], [0, 0, 1, 1], [], []>} : vector<32x16xf32>, vector<16x128xf32>, vector<32x128xf32> -> vector<32x128xf32>
    %c0_3 = arith.constant 0 : index
    %c0_4 = arith.constant 0 : index
    %3 = vector.load %arg3[%c0_3, %c0_4] : memref<32x1xf32, #tpu.memory_space<vmem>>, vector<32x1xf32>
    %4 = vector.broadcast %3 : vector<32x1xf32> to vector<32x128xf32>
    %5 = arith.addf %2, %4 : vector<32x128xf32>
    %6 = math.tanh %5 : vector<32x128xf32>
    %c0_5 = arith.constant 0 : index
    %c0_6 = arith.constant 0 : index
    %7 = vector.load %arg4[%c0_5, %c0_6] : memref<32x32xf32, #tpu.memory_space<vmem>>, vector<32x32xf32>
    %cst_7 = arith.constant dense<0.000000e+00> : vector<32x128xf32>
    %8 = tpu.matmul %7, %6, %cst_7 {dimension_numbers = #tpu.dot_dimension_numbers<[1], [0], [0], [1], [0, 0, 1, 1], [], []>} : vector<32x32xf32>, vector<32x128xf32>, vector<32x128xf32> -> vector<32x128xf32>
    %c0_8 = arith.constant 0 : index
    %c0_9 = arith.constant 0 : index
    %9 = vector.load %arg5[%c0_8, %c0_9] : memref<32x1xf32, #tpu.memory_space<vmem>>, vector<32x1xf32>
    %10 = vector.broadcast %9 : vector<32x1xf32> to vector<32x128xf32>
    %11 = arith.addf %8, %10 : vector<32x128xf32>
    %12 = math.tanh %11 : vector<32x128xf32>
    %c0_10 = arith.constant 0 : index
    %c0_11 = arith.constant 0 : index
    %13 = vector.load %arg6[%c0_10, %c0_11] : memref<32x1xf32, #tpu.memory_space<vmem>>, vector<32x1xf32>
    %14 = vector.broadcast %13 : vector<32x1xf32> to vector<32x128xf32>
    %15 = arith.mulf %12, %14 : vector<32x128xf32>
    %cst_12 = arith.constant dense<0.000000e+00> : vector<128xf32>
    %16 = vector.multi_reduction <add>, %15, %cst_12 [0] : vector<32x128xf32> to vector<128xf32>
    %17 = vector.shape_cast %16 : vector<128xf32> to vector<1x128xf32>
    %c0_13 = arith.constant 0 : index
    %c0_14 = arith.constant 0 : index
    %18 = vector.load %arg7[%c0_13, %c0_14] : memref<1x1xf32, #tpu.memory_space<vmem>>, vector<1x1xf32>
    %19 = vector.broadcast %18 : vector<1x1xf32> to vector<1x128xf32>
    %20 = arith.addf %17, %19 : vector<1x128xf32>
    %c0_15 = arith.constant 0 : index
    %c0_16 = arith.constant 0 : index
    %21 = vector.load %arg8[%c0_15, %c0_16] : memref<1x128xf32, #tpu.memory_space<vmem>>, vector<1x128xf32>
    tpu.vector_store %arg8[%c0_15, %c0_16], %20 {strides = array<i32>} : memref<1x128xf32, #tpu.memory_space<vmem>>, vector<1x128xf32>,
    return
  }
  func.func @transform_0(%arg0: i32) -> (i32, i32) {
    %c0_i32 = arith.constant 0 : i32
    %c0_i32_0 = arith.constant 0 : i32
    return %c0_i32, %arg0 : i32, i32
  }
  func.func @transform_1(%arg0: i32) -> (i32, i32) {
    %c0_i32 = arith.constant 0 : i32
    %c0_i32_0 = arith.constant 0 : i32
    %c0_i32_1 = arith.constant 0 : i32
    return %c0_i32, %c0_i32_0 : i32, i32
  }
  func.func @transform_2(%arg0: i32) -> (i32, i32) {
    %c0_i32 = arith.constant 0 : i32
    %c0_i32_0 = arith.constant 0 : i32
    %c0_i32_1 = arith.constant 0 : i32
    return %c0_i32, %c0_i32_0 : i32, i32
  }
  func.func @transform_3(%arg0: i32) -> (i32, i32) {
    %c0_i32 = arith.constant 0 : i32
    %c0_i32_0 = arith.constant 0 : i32
    %c0_i32_1 = arith.constant 0 : i32
    return %c0_i32, %c0_i32_0 : i32, i32
  }
  func.func @transform_4(%arg0: i32) -> (i32, i32) {
    %c0_i32 = arith.constant 0 : i32
    %c0_i32_0 = arith.constant 0 : i32
    %c0_i32_1 = arith.constant 0 : i32
    return %c0_i32, %c0_i32_0 : i32, i32
  }
  func.func @transform_5(%arg0: i32) -> (i32, i32) {
    %c0_i32 = arith.constant 0 : i32
    %c0_i32_0 = arith.constant 0 : i32
    %c0_i32_1 = arith.constant 0 : i32
    return %c0_i32, %c0_i32_0 : i32, i32
  }
  func.func @transform_6(%arg0: i32) -> (i32, i32) {
    %c0_i32 = arith.constant 0 : i32
    %c0_i32_0 = arith.constant 0 : i32
    %c0_i32_1 = arith.constant 0 : i32
    return %c0_i32, %c0_i32_0 : i32, i32
  }
  func.func @transform_7(%arg0: i32) -> (i32, i32) {
    %c0_i32 = arith.constant 0 : i32
    %c0_i32_0 = arith.constant 0 : i32
    return %c0_i32, %arg0 : i32, i32
  }
}

</mosaic_0001>

<llo_original>
// kernel: tpu_custom_call.1
$region0: #{tpu_custom_call.1}
  #allocation0 [shape = 'u32[]', space=smem, size = 0x4, offset = 0x4, fixed_abs, tag = 'smem constant byte address 0x4 - core index']
  #allocation1 [shape = 'u32[72,128]{1,0:T(1,128)}', space=vmem, size = 0x9000, scoped, tag = 'internal scratch']
  #allocation2 [shape = 'f32[1,1]{1,0:T(1,128)S(1)}', space=vmem, size = 0x200, scoped, tag = 'scoped memory for tpu_custom_call.1']
  %s0 = inlined_call_operand.vmem [shape: f32[16,128], index: 0, kind: input, shape index: {}]
  %s1 = inlined_call_operand.vmem [shape: f32[32,16], index: 1, kind: input, shape index: {}]
  %s2 = inlined_call_operand.vmem [shape: f32[32,1], index: 2, kind: input, shape index: {}]
  %s3 = inlined_call_operand.vmem [shape: f32[32,32], index: 3, kind: input, shape index: {}]
  %s4 = inlined_call_operand.vmem [shape: f32[32,1], index: 4, kind: input, shape index: {}]
  %s5 = inlined_call_operand.vmem [shape: f32[32,1], index: 5, kind: input, shape index: {}]
  %s6 = inlined_call_operand.<no memory space> [shape: f32[1,1], index: 6, kind: input, shape index: {}]
  %s7 = inlined_call_operand.hbm [shape: f32[1,128], index: 7, kind: output, shape index: {}]
  %s8 = sld [smem:[#allocation0]]
  $region38: #{tpu_custom_call.1} parent=0
    _
  %s10 = ssub.s32 1, %s8
  %s11 = scalar_select 0, %s10, %s8
  %v12 = vstv %s6
  %13 = vst [vmem:[#allocation2] sm:$0x1] %v12
  $region1: #{tpu_custom_call.1} parent=0
    #allocation3 [shape = 'u8[512]{0}', space=vmem, size = 0x400, scoped, tag = 'output window, operand 0, single buffered']
    #allocation4 [shape = 's32[1]{0}', space=sflag, size = 0x4, scoped, tag = 'scoped memory for tpu_custom_call.1']
    %14 = vsyncpa [#allocation4], 0
    // Predicated region
    $region2: #{tpu_custom_call.1} parent=1 // pred_check
      _
    $region3: #{tpu_custom_call.1} parent=1 // pred_check_branch
      %16 = sbr.rel (0) target = $region5
    $region4: #{tpu_custom_call.1} parent=1 // pred_region
      _
    $region5: #{tpu_custom_call.1} parent=1 // pred_fallthru
      _
    // Predicated region
    $region6: #{tpu_custom_call.1} parent=1 // pred_check
      _
    $region7: #{tpu_custom_call.1} parent=1 // pred_check_branch
      %18 = sbr.rel (0) target = $region9
    $region8: #{tpu_custom_call.1} parent=1 // pred_region
      _
    $region9: #{tpu_custom_call.1} parent=1 // pred_fallthru
      _
    // Predicated region
    $region10: #{tpu_custom_call.1} parent=1 // pred_check
      _
    $region11: #{tpu_custom_call.1} parent=1 // pred_check_branch
      %20 = sbr.rel (0) target = $region13
    $region12: #{tpu_custom_call.1} parent=1 // pred_region
      _
    $region13: #{tpu_custom_call.1} parent=1 // pred_fallthru
      _
    // Predicated region
    $region14: #{tpu_custom_call.1} parent=1 // pred_check
      _
    $region15: #{tpu_custom_call.1} parent=1 // pred_check_branch
      %22 = sbr.rel (0) target = $region17
    $region16: #{tpu_custom_call.1} parent=1 // pred_region
      _
    $region17: #{tpu_custom_call.1} parent=1 // pred_fallthru
      _
    // Predicated region
    $region18: #{tpu_custom_call.1} parent=1 // pred_check
      _
    $region19: #{tpu_custom_call.1} parent=1 // pred_check_branch
      %24 = sbr.rel (0) target = $region21
    $region20: #{tpu_custom_call.1} parent=1 // pred_region
      _
    $region21: #{tpu_custom_call.1} parent=1 // pred_fallthru
      _
    // Predicated region
    $region22: #{tpu_custom_call.1} parent=1 // pred_check
      _
    $region23: #{tpu_custom_call.1} parent=1 // pred_check_branch
      %26 = sbr.rel (0) target = $region25
    $region24: #{tpu_custom_call.1} parent=1 // pred_region
      _
    $region25: #{tpu_custom_call.1} parent=1 // pred_fallthru
      _
    // Predicated region
    $region26: #{tpu_custom_call.1} parent=1 // pred_check
      _
    $region27: #{tpu_custom_call.1} parent=1 // pred_check_branch
      %28 = sbr.rel (0) target = $region29
    $region28: #{tpu_custom_call.1} parent=1 // pred_region
      _
    $region29: #{tpu_custom_call.1} parent=1 // pred_fallthru
      _
    %v29 = vld [vmem:[%s1] sm:$0xff]
    %v30 = vld [vmem:[%s1 + $0x8] sm:$0xff]
    %v31 = vld [vmem:[%s1 + $0x10] sm:$0xff]
    %v32 = vld [vmem:[%s1 + $0x18] sm:$0xff]
    %v33 = vld [vmem:[%s0] sm:$0xff]
    %v34 = vld [vmem:[%s0 + $0x8] sm:$0xff]
    %v35 = vld [vmem:[%s2] sm:$0xff]
    %v36 = vld [vmem:[%s2 + $0x8] sm:$0xff]
    %v37 = vld [vmem:[%s2 + $0x10] sm:$0xff]
    %v38 = vld [vmem:[%s2 + $0x18] sm:$0xff]
    %40 = vset.pattern.permute.xlu0 0
    %41 = vperm.xlu0 %40, %v35
    %v42 = vpop.permute.xlu0 %41
    %45 = vset.pattern.permute.xlu0 0
    %46 = vperm.xlu0 %45, %v36
    %v47 = vpop.permute.xlu0 %46
    %50 = vset.pattern.permute.xlu0 0
    %51 = vperm.xlu0 %50, %v37
    %v52 = vpop.permute.xlu0 %51
    %55 = vset.pattern.permute.xlu0 0
    %56 = vperm.xlu0 %55, %v38
    %v57 = vpop.permute.xlu0 %56
    %vm59 = vcmask 130048
    %v61 = vsel %vm59, %v29, 0
    %v64 = vsel %vm59, %v30, 0
    %v67 = vsel %vm59, %v31, 0
    %v70 = vsel %vm59, %v32, 0
    %72 = vmatpush.msra.mxu0 0.0
    %73 = vmatpush.msra.mxu0 0.0
    %74 = vmatpush.msra.mxu0 0.0
    %75 = vmatpush.msra.mxu0 0.0
    %76 = vmatpush.msra.mxu0 0.0
    %77 = vmatpush.msra.mxu0 0.0
    %78 = vmatpush.msra.mxu0 0.0
    %79 = vmatpush.msra.mxu0 0.0
    %80 = vmatpush.msra.mxu0 0.0
    %81 = vmatpush.msra.mxu0 0.0
    %82 = vmatpush.msra.mxu0 0.0
    %83 = vmatpush.msra.mxu0 0.0
    %84 = vmatpush.msra.mxu0 0.0
    %85 = vmatpush.msra.mxu0 0.0
    %86 = vmatpush.msra.mxu0 %v34
    %87 = vmatpush.msra.mxu0 %v33
    %88 = vmatmul.f32.gmra.mxu0 %v61
    %v89 = vpop.f32.mrf.mxu0
    %v90 = vadd.f32 %v42, %v89
    %91 = vmatmul.f32.gmra.mxu0 %v64
    %v92 = vpop.f32.mrf.mxu0
    %v93 = vadd.f32 %v47, %v92
    %94 = vmatmul.f32.gmra.mxu0 %v67
    %v95 = vpop.f32.mrf.mxu0
    %v96 = vadd.f32 %v52, %v95
    %97 = vmatmul.f32.gmra.mxu0 %v70
    %v98 = vpop.f32.mrf.mxu0
    %v99 = vadd.f32 %v57, %v98
    %100 = vdwg.mxu0
    %v101 = vtanh.pop %v90
    %v102 = vtanh.pop %v93
    %v103 = vtanh.pop %v96
    %v104 = vtanh.pop %v99
    %v105 = vld [vmem:[%s3] sm:$0xff]
    %v106 = vld [vmem:[%s3 + $0x8] sm:$0xff]
    %v107 = vld [vmem:[%s3 + $0x10] sm:$0xff]
    %v108 = vld [vmem:[%s3 + $0x18] sm:$0xff]
    %v109 = vld [vmem:[%s4] sm:$0xff]
    %v110 = vld [vmem:[%s4 + $0x8] sm:$0xff]
    %v111 = vld [vmem:[%s4 + $0x10] sm:$0xff]
    %v112 = vld [vmem:[%s4 + $0x18] sm:$0xff]
    %114 = vset.pattern.permute.xlu0 0
    %115 = vperm.xlu0 %114, %v109
    %v116 = vpop.permute.xlu0 %115
    %119 = vset.pattern.permute.xlu0 0
    %120 = vperm.xlu0 %119, %v110
    %v121 = vpop.permute.xlu0 %120
    %124 = vset.pattern.permute.xlu0 0
    %125 = vperm.xlu0 %124, %v111
    %v126 = vpop.permute.xlu0 %125
    %129 = vset.pattern.permute.xlu0 0
    %130 = vperm.xlu0 %129, %v112
    %v131 = vpop.permute.xlu0 %130
    %vm133 = vcmask 261120
    %v135 = vsel %vm133, %v105, 0
    %v138 = vsel %vm133, %v106, 0
    %v141 = vsel %vm133, %v107, 0
    %v144 = vsel %vm133, %v108, 0
    %146 = vmatpush.msra.mxu0 0.0
    %147 = vmatpush.msra.mxu0 0.0
    %148 = vmatpush.msra.mxu0 0.0
    %149 = vmatpush.msra.mxu0 0.0
    %150 = vmatpush.msra.mxu0 0.0
    %151 = vmatpush.msra.mxu0 0.0
    %152 = vmatpush.msra.mxu0 0.0
    %153 = vmatpush.msra.mxu0 0.0
    %154 = vmatpush.msra.mxu0 0.0
    %155 = vmatpush.msra.mxu0 0.0
    %156 = vmatpush.msra.mxu0 0.0
    %157 = vmatpush.msra.mxu0 0.0
    %158 = vmatpush.msra.mxu0 %v104
    %159 = vmatpush.msra.mxu0 %v103
    %160 = vmatpush.msra.mxu0 %v102
    %161 = vmatpush.msra.mxu0 %v101
    %162 = vmatmul.f32.gmra.mxu0 %v135
    %v163 = vpop.f32.mrf.mxu0
    %v164 = vadd.f32 %v116, %v163
    %165 = vmatmul.f32.gmra.mxu0 %v138
    %v166 = vpop.f32.mrf.mxu0
    %v167 = vadd.f32 %v121, %v166
    %168 = vmatmul.f32.gmra.mxu0 %v141
    %v169 = vpop.f32.mrf.mxu0
    %v170 = vadd.f32 %v126, %v169
    %171 = vmatmul.f32.gmra.mxu0 %v144
    %v172 = vpop.f32.mrf.mxu0
    %v173 = vadd.f32 %v131, %v172
    %174 = vdwg.mxu0
    %v175 = vtanh.pop %v164
    %v176 = vtanh.pop %v167
    %v177 = vtanh.pop %v170
    %v178 = vtanh.pop %v173
    %v179 = vld [vmem:[%s5] sm:$0xff]
    %v180 = vld [vmem:[%s5 + $0x8] sm:$0xff]
    %v181 = vld [vmem:[%s5 + $0x10] sm:$0xff]
    %v182 = vld [vmem:[%s5 + $0x18] sm:$0xff]
    %184 = vset.pattern.permute.xlu0 0
    %185 = vperm.xlu0 %184, %v179
    %v186 = vpop.permute.xlu0 %185
    %189 = vset.pattern.permute.xlu0 0
    %190 = vperm.xlu0 %189, %v180
    %v191 = vpop.permute.xlu0 %190
    %194 = vset.pattern.permute.xlu0 0
    %195 = vperm.xlu0 %194, %v181
    %v196 = vpop.permute.xlu0 %195
    %199 = vset.pattern.permute.xlu0 0
    %200 = vperm.xlu0 %199, %v182
    %v201 = vpop.permute.xlu0 %200
    %v203 = vmul.f32 %v175, %v186
    %v204 = vmul.f32 %v176, %v191
    %v205 = vmul.f32 %v177, %v196
    %v206 = vmul.f32 %v178, %v201
    %v207 = vadd.f32 %v203, %v204
    %v208 = vadd.f32 %v207, %v205
    %v209 = vadd.f32 %v208, %v206
    %v210 = vrot.slane %v209, 4
    %v211 = vadd.f32 %v209, %v210
    %v212 = vrot.slane %v211, 2
    %v213 = vadd.f32 %v211, %v212
    %v214 = vrot.slane %v213, 1
    %v215 = vadd.f32 %v213, %v214
    %v216 = vld [vmem:[#allocation2] sm:$0x1]
    %218 = vset.pattern.permute.xlu0 0
    %219 = vperm.xlu0 %218, %v216
    %v220 = vpop.permute.xlu0 %219
    %v222 = vperm.slane %v220, 0
    %v223 = vadd.f32 %v215, %v222
    %224 = vst [vmem:[#allocation3] sm:$0x1] %v223
    // Predicated region
    $region30: #{tpu_custom_call.1} parent=1 // pred_check
      _
    $region31: #{tpu_custom_call.1} parent=1 // pred_check_branch
      %226 = sbr.rel (0) target = $region33
    $region32: #{tpu_custom_call.1} parent=1 // pred_region
      %228 = vsyncadd [#allocation4], 0
      %s230 = sshll.u32 [#allocation3], 4
      %s231 = int_to_ptr.vmem [resolvable:$true] %s230
      %s232 = sshll.u32 %s7, 4
      %s233 = int_to_ptr.hbm [resolvable:$true] %s232
      %235 = dma.vmem_to_hbm [thread:$0]  %s231, 16, %s233, [#allocation4]
    $region33: #{tpu_custom_call.1} parent=1 // pred_fallthru
      _
    // Predicated region
    $region34: #{tpu_custom_call.1} parent=1 // pred_check
      _
    $region35: #{tpu_custom_call.1} parent=1 // pred_check_branch
      %237 = sbr.rel (0) target = $region37
    $region36: #{tpu_custom_call.1} parent=1 // pred_region
      %239 = dma.done [#allocation4], 16
    $region37: #{tpu_custom_call.1} parent=1 // pred_fallthru
      _
    %240 = vsyncpa [#allocation4], 1

</llo_original>
